<compile_context>
chip_gen: v7x
topology: tpu7x:2x2x1
jax: 0.10.0
libtpu: 0.0.40
codegen_flags: <defaults>
</compile_context>

<pallas_src>
import time

import jax
import jax.numpy as jnp
from jax.experimental import pallas as pl
from jax.experimental.pallas import tpu as pltpu


def _pick_tile(n, cap, quantum):
    """Largest t <= cap with n % t == 0 and t % quantum == 0; falls back to n."""
    cap = min(cap, n)
    t = (cap // quantum) * quantum
    while t >= quantum:
        if n % t == 0:
            return t
        t -= quantum
    return n  # full-dim block (always legal regardless of (8,128) tiling)


def _make_agg_kernel(tile_k, xw_resident):
    """Aggregation: out[i-tile] = sum_k A[i-tile, k-tile] @ XW[k-tile] + b.

    Grid = (row_tiles [parallel], k_tiles [arbitrary, last]).  The f32
    accumulator lives in VMEM scratch; init on k==0, bias-add + store on the
    last k step.  A and XW arrive as bf16; accumulation is f32.
    """

    def kernel(a_ref, xw_ref, b_ref, o_ref, acc_ref):
        k = pl.program_id(1)

        @pl.when(k == 0)
        def _():
            acc_ref[...] = jnp.zeros_like(acc_ref)

        if xw_resident:
            # Whole XW is resident in VMEM; take the matching K-chunk.
            start = pl.multiple_of(k * tile_k, tile_k)
            xw = xw_ref[pl.ds(start, tile_k), :]
        else:
            xw = xw_ref[...]

        acc_ref[...] += jnp.dot(a_ref[...], xw, preferred_element_type=jnp.float32)

        @pl.when(k == pl.num_programs(1) - 1)
        def _():
            o_ref[...] = (acc_ref[...] + b_ref[...]).astype(o_ref.dtype)

    return kernel


def gcn_spmm(a_hat, x, w, b, *, tile_n=None, tile_k=None):
    """out = a_hat @ (x @ w) + b  (feature transform hoisted, aggregation in Pallas).

    a_hat should arrive pre-cast to bf16 (cached per graph by the caller);
    casting here would be a per-call extra HBM pass over the NxN matrix.
    """
    n, _ = x.shape
    f_out = w.shape[1]
    assert a_hat.shape == (n, n)

    # Dense feature transform outside the kernel (K=F_in is too small to fill
    # the MXU; keeping it fused only wasted VMEM and serialized the grid).
    xw = jnp.dot(x, w, preferred_element_type=jnp.float32)

    # Lane-dense output: pad F_out up to a multiple of 128, slice back at the end.
    f_out_p = max(128, -(-f_out // 128) * 128)
    if f_out_p != f_out:
        xw = jnp.pad(xw, ((0, 0), (0, f_out_p - f_out)))
        b = jnp.pad(b, (0, f_out_p - f_out))

    # Tile selection: big tiles to amortize per-step overhead, capped against
    # v7x's 64 MiB VMEM; row tiles capped at N//2 so the parallel axis has >=2
    # tiles (megacore).  Tiles are divisors of N (see TODO about padding N).
    if tile_n is None:
        cap_n = min(1024, n // 2) if n >= 16 else n
        tile_n = _pick_tile(n, cap_n, 8)
    if tile_k is None:
        tile_k = _pick_tile(n, 4096, 128)
    assert n % tile_n == 0 and n % tile_k == 0, "N must be divisible by the tile sizes"

    if a_hat.dtype != jnp.bfloat16:
        a_hat = a_hat.astype(jnp.bfloat16)  # fallback; callers should pre-cast/cache
    xw_bf16 = xw.astype(jnp.bfloat16)
    b2d = b.reshape(1, f_out_p).astype(jnp.float32)

    # XW residency: constant block index -> DMA'd once, no re-stream per row
    # tile.  Budget: 2 buffers of N*F_out bf16 must stay well under VMEM.
    xw_resident = n * f_out_p * 2 <= 8 * 1024 * 1024
    if xw_resident:
        xw_spec = pl.BlockSpec((n, f_out_p), lambda i, k: (0, 0))
    else:
        xw_spec = pl.BlockSpec((tile_k, f_out_p), lambda i, k: (k, 0))

    out = pl.pallas_call(
        _make_agg_kernel(tile_k, xw_resident),
        out_shape=jax.ShapeDtypeStruct((n, f_out_p), jnp.float32),
        grid_spec=pltpu.PrefetchScalarGridSpec(
            num_scalar_prefetch=0,
            grid=(n // tile_n, n // tile_k),
            in_specs=[
                # streamed A_hat tile (rows x K-chunk), bf16
                pl.BlockSpec((tile_n, tile_k), lambda i, k: (i, k)),
                # XW: resident (constant block) or streamed K-chunk, bf16
                xw_spec,
                # bias row, constant block, f32
                pl.BlockSpec((1, f_out_p), lambda i, k: (0, 0)),
            ],
            out_specs=pl.BlockSpec((tile_n, f_out_p), lambda i, k: (i, 0)),
            scratch_shapes=[pltpu.VMEM((tile_n, f_out_p), jnp.float32)],
        ),
        compiler_params=pltpu.CompilerParams(
            # rows independent -> parallel (uses both TCs on v7x);
            # K is a reduction carried in scratch -> arbitrary, last.
            dimension_semantics=("parallel", "arbitrary"),
            # Tiles are sized so the double-buffered footprint stays ~20-34 MiB:
            # above v5e's 16 MiB / v6e-v7x's 32 MiB scoped defaults, below v7x's
            # 64 MiB physical VMEM.
            vmem_limit_bytes=48 * 1024 * 1024,
        ),
    )(a_hat, xw_bf16, b2d)

    if f_out_p != f_out:
        out = out[:, :f_out]
    return out


class GNNA_SpMM:
    """JAX/Pallas port of the PyTorch GNNA_SpMM module (wraps one GCNConv)."""

    def __init__(self, in_feats, out_feats, paras=None):
        self.name = "SpMM"
        if paras is not None:
            self.w = jnp.asarray(paras["w0"], jnp.float32)
            self.b = jnp.asarray(paras["b0"], jnp.float32)
        else:
            # Deterministic Glorot-style init (synthetic weights, no checkpoint).
            kw, _ = jax.random.split(jax.random.PRNGKey(42))
            scale = (6.0 / (in_feats + out_feats)) ** 0.5
            self.w = jax.random.uniform(
                kw, (in_feats, out_feats), jnp.float32, -scale, scale
            )
            self.b = jnp.zeros((out_feats,), jnp.float32)
        self._fn = jax.jit(lambda a_bf16, x: gcn_spmm(a_bf16, x, self.w, self.b))
        # Per-graph cache of the bf16 adjacency (A_hat is a per-graph constant;
        # re-casting it every call would add a full extra HBM pass over NxN).
        self._a_key = None
        self._a_bf16 = None

    def _adjacency_bf16(self, a_hat):
        if a_hat.dtype == jnp.bfloat16:
            return a_hat
        if self._a_key is not a_hat:
            self._a_key = a_hat  # hold a ref so `is` identity stays valid
            self._a_bf16 = jax.block_until_ready(
                jnp.asarray(a_hat).astype(jnp.bfloat16)
            )
        return self._a_bf16

    def forward(self, a_hat, input_feature):
        # TODO(synk): the original module returns a CUDA-event SpMM-only time;
        # host wall-clock around a dispatch overcounts for microsecond kernels —
        # use an xprof trace of the pallas_call op for real comparisons.  Here:
        # warm up (exclude compile) then report the min over a few timed runs.
        a_bf16 = self._adjacency_bf16(a_hat)
        out = jax.block_until_ready(self._fn(a_bf16, input_feature))  # warm-up
        spmm_time = float("inf")
        for _ in range(3):
            t0 = time.perf_counter()
            out = jax.block_until_ready(self._fn(a_bf16, input_feature))
            spmm_time = min(spmm_time, time.perf_counter() - t0)
        return out, spmm_time

    __call__ = forward


def _make_normalized_adjacency(key, n, density=0.05):
    """Build A_hat = D^{-1/2} (A + I) D^{-1/2} from a random undirected graph."""
    u = jax.random.uniform(key, (n, n))
    a = (u < density).astype(jnp.float32)
    a = jnp.maximum(a, a.T)                       # symmetrize
    a = a + jnp.eye(n, dtype=jnp.float32)         # self loops
    a = jnp.minimum(a, 1.0)
    deg = jnp.sum(a, axis=1)
    d_inv_sqrt = 1.0 / jnp.sqrt(deg)
    return a * d_inv_sqrt[:, None] * d_inv_sqrt[None, :]


if __name__ == "__main__":
    N, IN_FEATS, OUT_FEATS = 128, 64, 128

    key = jax.random.PRNGKey(0)
    k_adj, k_feat = jax.random.split(key)

    a_hat = _make_normalized_adjacency(k_adj, N)
    x = jax.random.normal(k_feat, (N, IN_FEATS), jnp.float32)

    model = GNNA_SpMM(IN_FEATS, OUT_FEATS)
    out, spmm_time = model(a_hat, x)
    out = jax.block_until_ready(out)
    assert out.shape == (N, OUT_FEATS)

    # References: bf16-consistent (tight check of the kernel math) and full-f32
    # (loose; bf16 cast of A/XW costs ~8 mantissa bits — documented tradeoff).
    xw_f32 = x @ model.w
    ref_f32 = a_hat @ xw_f32 + model.b[None, :]
    ref_bf16 = (
        a_hat.astype(jnp.bfloat16).astype(jnp.float32)
        @ xw_f32.astype(jnp.bfloat16).astype(jnp.float32)
        + model.b[None, :]
    )
    assert jnp.allclose(out, ref_bf16, atol=2e-3, rtol=2e-3)
    assert jnp.allclose(out, ref_f32, atol=5e-2, rtol=5e-2)

    print("KERNEL_OK")
</pallas_src>

<mosaic_0001>
module attributes {stable_mosaic.version = 11 : i64} {
  func.func @kernel(%arg0: i32, %arg1: i32, %arg2: memref<64x128xbf16, #tpu.memory_space<vmem>>, %arg3: memref<128x128xbf16, #tpu.memory_space<vmem>>, %arg4: memref<1x128xf32, #tpu.memory_space<vmem>>, %arg5: memref<64x128xf32, #tpu.memory_space<vmem>>, %arg6: memref<64x128xf32, #tpu.memory_space<vmem>>) attributes {dimension_semantics = [#tpu.dimension_semantics<parallel>, #tpu.dimension_semantics<arbitrary>], iteration_bounds = array<i64: 2, 1>, scalar_prefetch = 0 : i64, scratch_operands = 1 : i64, tpu.core_type = #tpu.core_type<tc>, window_params = [{transform_indices = @transform_0, window_bounds = array<i64: 64, 128>}, {pipeline_mode = #tpu.pipeline_mode<synchronous>, transform_indices = @transform_1, window_bounds = array<i64: 128, 128>}, {pipeline_mode = #tpu.pipeline_mode<synchronous>, transform_indices = @transform_2, window_bounds = array<i64: 1, 128>}, {transform_indices = @transform_3, window_bounds = array<i64: 64, 128>}]} {
    %c0_i32 = arith.constant 0 : i32
    %0 = arith.cmpi eq, %arg1, %c0_i32 : i32
    %1 = arith.extui %0 : i1 to i32
    %c0_i32_0 = arith.constant 0 : i32
    %2 = arith.cmpi ne, %1, %c0_i32_0 : i32
    scf.if %2 {
      %cst_9 = arith.constant 0.000000e+00 : f32
      %15 = vector.broadcast %cst_9 : f32 to vector<64x128xf32>
      %c0_10 = arith.constant 0 : index
      %c0_11 = arith.constant 0 : index
      %16 = vector.load %arg6[%c0_10, %c0_11] : memref<64x128xf32, #tpu.memory_space<vmem>>, vector<64x128xf32>
      tpu.vector_store %arg6[%c0_10, %c0_11], %15 {strides = array<i32>} : memref<64x128xf32, #tpu.memory_space<vmem>>, vector<64x128xf32>,
    } else {
    }
    %c128_i32 = arith.constant 128 : i32
    %3 = arith.muli %arg1, %c128_i32 : i32
    %4 = tpu.assume_multiple %3, 128 : i32
    %5 = arith.index_cast %4 : i32 to index
    %c0 = arith.constant 0 : index
    %6 = vector.load %arg3[%5, %c0] : memref<128x128xbf16, #tpu.memory_space<vmem>>, vector<128x128xbf16>
    %c0_1 = arith.constant 0 : index
    %c0_2 = arith.constant 0 : index
    %7 = vector.load %arg6[%c0_1, %c0_2] : memref<64x128xf32, #tpu.memory_space<vmem>>, vector<64x128xf32>
    %c0_3 = arith.constant 0 : index
    %c0_4 = arith.constant 0 : index
    %8 = vector.load %arg2[%c0_3, %c0_4] : memref<64x128xbf16, #tpu.memory_space<vmem>>, vector<64x128xbf16>
    %cst = arith.constant dense<0.000000e+00> : vector<64x128xf32>
    %9 = tpu.matmul %8, %6, %cst {dimension_numbers = #tpu.dot_dimension_numbers<[1], [0], [0], [1], [0, 0, 1, 1], [], []>} : vector<64x128xbf16>, vector<128x128xbf16>, vector<64x128xf32> -> vector<64x128xf32>
    %10 = arith.addf %7, %9 : vector<64x128xf32>
    %c0_5 = arith.constant 0 : index
    %c0_6 = arith.constant 0 : index
    %11 = vector.load %arg6[%c0_5, %c0_6] : memref<64x128xf32, #tpu.memory_space<vmem>>, vector<64x128xf32>
    tpu.vector_store %arg6[%c0_5, %c0_6], %10 {strides = array<i32>} : memref<64x128xf32, #tpu.memory_space<vmem>>, vector<64x128xf32>,
    %c0_i32_7 = arith.constant 0 : i32
    %12 = arith.cmpi eq, %arg1, %c0_i32_7 : i32
    %13 = arith.extui %12 : i1 to i32
    %c0_i32_8 = arith.constant 0 : i32
    %14 = arith.cmpi ne, %13, %c0_i32_8 : i32
    scf.if %14 {
      %c0_9 = arith.constant 0 : index
      %c0_10 = arith.constant 0 : index
      %15 = vector.load %arg6[%c0_9, %c0_10] : memref<64x128xf32, #tpu.memory_space<vmem>>, vector<64x128xf32>
      %c0_11 = arith.constant 0 : index
      %c0_12 = arith.constant 0 : index
      %16 = vector.load %arg4[%c0_11, %c0_12] : memref<1x128xf32, #tpu.memory_space<vmem>>, vector<1x128xf32>
      %17 = vector.broadcast %16 : vector<1x128xf32> to vector<64x128xf32>
      %18 = arith.addf %15, %17 : vector<64x128xf32>
      %c0_13 = arith.constant 0 : index
      %c0_14 = arith.constant 0 : index
      %19 = vector.load %arg5[%c0_13, %c0_14] : memref<64x128xf32, #tpu.memory_space<vmem>>, vector<64x128xf32>
      tpu.vector_store %arg5[%c0_13, %c0_14], %18 {strides = array<i32>} : memref<64x128xf32, #tpu.memory_space<vmem>>, vector<64x128xf32>,
    } else {
    }
    return
  }
  func.func @transform_0(%arg0: i32, %arg1: i32) -> (i32, i32) {
    %c0_i32 = arith.constant 0 : i32
    return %arg0, %arg1 : i32, i32
  }
  func.func @transform_1(%arg0: i32, %arg1: i32) -> (i32, i32) {
    %c0_i32 = arith.constant 0 : i32
    %c0_i32_0 = arith.constant 0 : i32
    %c0_i32_1 = arith.constant 0 : i32
    return %c0_i32, %c0_i32_0 : i32, i32
  }
  func.func @transform_2(%arg0: i32, %arg1: i32) -> (i32, i32) {
    %c0_i32 = arith.constant 0 : i32
    %c0_i32_0 = arith.constant 0 : i32
    %c0_i32_1 = arith.constant 0 : i32
    return %c0_i32, %c0_i32_0 : i32, i32
  }
  func.func @transform_3(%arg0: i32, %arg1: i32) -> (i32, i32) {
    %c0_i32 = arith.constant 0 : i32
    %c0_i32_0 = arith.constant 0 : i32
    return %arg0, %c0_i32 : i32, i32
  }
}

</mosaic_0001>

<llo_original>
// kernel: _lambda_.1
$region0: #{_lambda_.1}
  #allocation0 [shape = 'u32[]', space=smem, size = 0x4, offset = 0x4, fixed_abs, tag = 'smem constant byte address 0x4 - core index']
  #allocation1 [shape = 'u32[144,128]{1,0:T(1,128)}', space=vmem, size = 0x12000, scoped, tag = 'internal scratch']
  #allocation2 [shape = 'f32[64,128]{1,0:T(8,128)}', space=vmem, size = 0x8000, scoped, tag = 'scratch operand']
  %s0 = inlined_call_operand.vmem [shape: bf16[128,128], index: 0, kind: input, shape index: {}]
  %s1 = inlined_call_operand.vmem [shape: bf16[128,128], index: 1, kind: input, shape index: {}]
  %s2 = inlined_call_operand.vmem [shape: f32[1,128], index: 2, kind: input, shape index: {}]
  %s3 = inlined_call_operand.hbm [shape: f32[128,128], index: 3, kind: output, shape index: {}]
  %s4 = sld [smem:[#allocation0]]
  $region53: #{_lambda_.1} parent=0
    _
  %s6 = ssub.s32 1, %s4
  %s7 = scalar_select 0, %s6, %s4
  $region1: #{_lambda_.1} parent=0
    #allocation3 [shape = 'u8[65536]{0}', space=vmem, size = 0x10000, scoped, tag = 'output window, operand 0']
    #allocation4 [shape = 's32[2]{0}', space=sflag, size = 0x8, scoped, tag = 'scoped memory for _lambda_.1']
    %8 = vsyncpa [#allocation4], 0
    %s9 = scalar_lea.sflag [#allocation4], 1
    %10 = vsyncpa %s9, 0
    loop: start=0, step=1, limit=4
    $region2: #{_lambda_.1} parent=1 // loop_pre_header
      _
    $region3: #{_lambda_.1} parent=1 // loop_header
      %s12 = sphi 0, %s16
      %p13 = scmp.ge.s32.totalorder %s12, 4
      %s19 = sphi 0, %s31
      %s20 = sphi 0, %s27
      %s21 = sphi 0, %s19
      %s22 = sphi 0, %s20
      %s23 = sphi 0, %s21
      %s24 = sphi 0, %s22
      %s36 = sphi 0, %s38
      %s39 = sphi 0, %s36
      %s40 = sphi 0, %s39
      %s56 = sphi 0, %s40
      %s60 = sphi 0, %s60
      %s62 = sphi 0, %s60
      %s63 = sphi 0, %s62
      %s77 = sphi 0, %s63
      %s81 = sphi 0, %s81
      %s83 = sphi 0, %s81
      %s84 = sphi 0, %s83
      %s98 = sphi 0, %s84
      %s104 = sphi 0, %s106
      %s107 = sphi 0, %s104
      %s108 = sphi 0, %s107
      %s124 = sphi 0, %s108
    $region4: #{_lambda_.1} parent=1 // loop_header_branch
      %15 = sbr.rel (%p13) target = $region8
    $region5: #{_lambda_.1} parent=1 // loop_body
      %s17 = ssub.s32 %s12, 1
      %s18 = ssub.s32 %s12, 2
      %s25 = sadd.s32 1, %s20
      %p26 = scmp.ge.s32.totalorder %s25, 1
      %s27 = scalar_select %p26, 0, %s25
      %s28 = sadd.s32 1, %s19
      %s29 = scalar_select %p26, %s28, %s19
      %p30 = scmp.ge.s32.totalorder %s29, 2
      %s31 = scalar_select %p30, 0, %s29
      %s32 = ssub.s32 %s19, %s31
      %s33 = ssub.s32 %s20, %s27
      %s34 = sor.u32 %s32, %s33
      %p35 = scmp.eq.s32.totalorder %s34, 0
      %s37 = sadd.s32 %s36, 1
      %s38 = scalar_select %p35, %s36, %s37
      %p41 = pneg %p35
      %p42 = scmp.eq.s32.totalorder %s12, 1
      %p43 = por %p41, %p42
      %p44 = scmp.ne.s32.totalorder %s36, %s39
      %p45 = scmp.eq.s32.totalorder %s12, 0
      %p46 = por %p44, %p45
      %p47 = scmp.ne.s32.totalorder %s36, %s39
      %p48 = scmp.eq.s32.totalorder %s17, 1
      %p49 = por %p47, %p48
      %p50 = scmp.ne.s32.totalorder %s39, %s40
      %p51 = scmp.eq.s32.totalorder %s17, 0
      %p52 = por %p50, %p51
      %p53 = scmp.ne.s32.totalorder %s39, %s40
      %p54 = scmp.eq.s32.totalorder %s18, 1
      %p55 = por %p53, %p54
      %p57 = scmp.ne.s32.totalorder %s40, %s56
      %p58 = scmp.eq.s32.totalorder %s18, 0
      %p59 = por %p57, %p58
      %s61 = sadd.s32 %s60, 1
      %p64 = scmp.eq.s32.totalorder %s12, 1
      %p65 = scmp.ne.s32.totalorder %s60, %s62
      %p66 = scmp.eq.s32.totalorder %s12, 0
      %p67 = por %p65, %p66
      %p68 = scmp.ne.s32.totalorder %s60, %s62
      %p69 = scmp.eq.s32.totalorder %s17, 1
      %p70 = por %p68, %p69
      %p71 = scmp.ne.s32.totalorder %s62, %s63
      %p72 = scmp.eq.s32.totalorder %s17, 0
      %p73 = por %p71, %p72
      %p74 = scmp.ne.s32.totalorder %s62, %s63
      %p75 = scmp.eq.s32.totalorder %s18, 1
      %p76 = por %p74, %p75
      %p78 = scmp.ne.s32.totalorder %s63, %s77
      %p79 = scmp.eq.s32.totalorder %s18, 0
      %p80 = por %p78, %p79
      %s82 = sadd.s32 %s81, 1
      %p85 = scmp.eq.s32.totalorder %s12, 1
      %p86 = scmp.ne.s32.totalorder %s81, %s83
      %p87 = scmp.eq.s32.totalorder %s12, 0
      %p88 = por %p86, %p87
      %p89 = scmp.ne.s32.totalorder %s81, %s83
      %p90 = scmp.eq.s32.totalorder %s17, 1
      %p91 = por %p89, %p90
      %p92 = scmp.ne.s32.totalorder %s83, %s84
      %p93 = scmp.eq.s32.totalorder %s17, 0
      %p94 = por %p92, %p93
      %p95 = scmp.ne.s32.totalorder %s83, %s84
      %p96 = scmp.eq.s32.totalorder %s18, 1
      %p97 = por %p95, %p96
      %p99 = scmp.ne.s32.totalorder %s84, %s98
      %p100 = scmp.eq.s32.totalorder %s18, 0
      %p101 = por %p99, %p100
      %s102 = ssub.s32 %s19, %s31
      %p103 = scmp.eq.s32.totalorder %s102, 0
      %s105 = sadd.s32 %s104, 1
      %s106 = scalar_select %p103, %s104, %s105
      %p109 = pneg %p103
      %p110 = scmp.eq.s32.totalorder %s12, 1
      %p111 = por %p109, %p110
      %p112 = scmp.ne.s32.totalorder %s104, %s107
      %p113 = scmp.eq.s32.totalorder %s12, 0
      %p114 = por %p112, %p113
      %p115 = scmp.ne.s32.totalorder %s104, %s107
      %p116 = scmp.eq.s32.totalorder %s17, 1
      %p117 = por %p115, %p116
      %p118 = scmp.ne.s32.totalorder %s107, %s108
      %p119 = scmp.eq.s32.totalorder %s17, 0
      %p120 = por %p118, %p119
      %p121 = scmp.ne.s32.totalorder %s107, %s108
      %p122 = scmp.eq.s32.totalorder %s18, 1
      %p123 = por %p121, %p122
      %p125 = scmp.ne.s32.totalorder %s108, %s124
      %p126 = scmp.eq.s32.totalorder %s18, 0
      %p127 = por %p125, %p126
      %p128 = scmp.le.s32.totalorder 1, %s12
      %p129 = scmp.lt.s32.totalorder %s12, 3
      %p130 = pnand %p128, %p129
      %p131 = pneg %p130
      // Predicated region
      $region9: #{_lambda_.1} parent=5 // pred_check
        _
      $region10: #{_lambda_.1} parent=5 // pred_check_branch
        %133 = sbr.rel (%p130) target = $region12
      $region11: #{_lambda_.1} parent=5 // pred_region
        %s134 = ssub.s32 %s12, 1
        // Predicated region
        $region13: #{_lambda_.1} parent=11 // pred_check
          %p135 = pneg %p73
        $region14: #{_lambda_.1} parent=11 // pred_check_branch
          %137 = sbr.rel (%p135) target = $region16
        $region15: #{_lambda_.1} parent=11 // pred_region
          _
        $region16: #{_lambda_.1} parent=11 // pred_fallthru
          _
        // Predicated region
        $region17: #{_lambda_.1} parent=11 // pred_check
          %p138 = pneg %p94
        $region18: #{_lambda_.1} parent=11 // pred_check_branch
          %140 = sbr.rel (%p138) target = $region20
        $region19: #{_lambda_.1} parent=11 // pred_region
          _
        $region20: #{_lambda_.1} parent=11 // pred_fallthru
          _
      $region12: #{_lambda_.1} parent=5 // pred_fallthru
        _
      %p141 = scmp.lt.s32.totalorder %s12, 2
      // Predicated region
      $region21: #{_lambda_.1} parent=5 // pred_check
        %p142 = pneg %p141
      $region22: #{_lambda_.1} parent=5 // pred_check_branch
        %144 = sbr.rel (%p142) target = $region24
      $region23: #{_lambda_.1} parent=5 // pred_region
        // Predicated region
        $region25: #{_lambda_.1} parent=23 // pred_check
          %p145 = pneg %p46
        $region26: #{_lambda_.1} parent=23 // pred_check_branch
          %147 = sbr.rel (%p145) target = $region28
        $region27: #{_lambda_.1} parent=23 // pred_region
          %s148 = smul.u32 8, %s19
          %p149 = scmp.lt.s32.totalorder %s148, 15
          %s150 = scalar_select %p149, %s148, 15
          %p151 = scmp.lt.s32.totalorder %s20, 0
          %s152 = scalar_select %p151, %s20, 0
          %s153 = sadd.s32 %s152, %s150
          %s154 = smul.addr %s153, 4
          %s155 = scalar_lea.vmem %s0, %s154
          %s156 = smul.u32 8, %s19
        $region28: #{_lambda_.1} parent=23 // pred_fallthru
          _
      $region24: #{_lambda_.1} parent=5 // pred_fallthru
        _
      %p157 = scmp.le.s32.totalorder 1, %s12
      %p158 = scmp.lt.s32.totalorder %s12, 3
      %p159 = pnand %p157, %p158
      %p160 = pneg %p159
      // Predicated region
      $region29: #{_lambda_.1} parent=5 // pred_check
        _
      $region30: #{_lambda_.1} parent=5 // pred_check_branch
        %162 = sbr.rel (%p159) target = $region32
      $region31: #{_lambda_.1} parent=5 // pred_region
        %s163 = ssub.s32 %s12, 1
        %s164 = smul.u32 8, %s21
        %p165 = scmp.lt.s32.totalorder %s164, 15
        %s166 = scalar_select %p165, %s164, 15
        %p167 = scmp.lt.s32.totalorder %s22, 0
        %s168 = scalar_select %p167, %s22, 0
        %s169 = sadd.s32 %s168, %s166
        %s170 = smul.addr %s169, 4
        %s171 = scalar_lea.vmem %s0, %s170
        %p172 = pneg %p52
        %p173 = pneg %p49
        %p174 = pneg %p73
        %p175 = pneg %p70
        %p176 = pneg %p94
        %p177 = pneg %p91
        %p178 = pneg %p120
        %p179 = pneg %p117
        %s180 = sand.u32 %s107, 1
        %s181 = scalar_lea.sflag [#allocation4], %s180
        %s182 = sand.u32 %s107, 1
        %s183 = smul.addr %s182, 64
        %s184 = scalar_lea.vmem [#allocation3], %s183
        %s185 = smul.u32 8, %s21
        %p186 = scmp.lt.s32.totalorder %s185, 15
        %s187 = scalar_select %p186, %s185, 15
        %p188 = scmp.lt.s32.totalorder %s22, 0
        %s189 = scalar_select %p188, %s22, 0
        %s190 = sadd.s32 %s189, %s187
        %s191 = smul.addr %s190, 4
        %s192 = scalar_lea.vmem %s0, %s191
        %s193 = smul.u32 8, %s21
        %s194 = smul.u32 8, %s21
        %p196 = scmp.eq.s32.totalorder %s22, 0
        // Predicated region
        $region33: #{_lambda_.1} parent=31 // pred_check
          %p197 = pneg %p196
        $region34: #{_lambda_.1} parent=31 // pred_check_branch
          %199 = sbr.rel (%p197) target = $region36
        $region35: #{_lambda_.1} parent=31 // pred_region
          %200 = vst [vmem:[#allocation2] sm:$0xff] 0.0
          %201 = vst [vmem:[#allocation2 + $0x8] sm:$0xff] 0.0
          %202 = vst [vmem:[#allocation2 + $0x10] sm:$0xff] 0.0
          %203 = vst [vmem:[#allocation2 + $0x18] sm:$0xff] 0.0
          %204 = vst [vmem:[#allocation2 + $0x20] sm:$0xff] 0.0
          %205 = vst [vmem:[#allocation2 + $0x28] sm:$0xff] 0.0
          %206 = vst [vmem:[#allocation2 + $0x30] sm:$0xff] 0.0
          %207 = vst [vmem:[#allocation2 + $0x38] sm:$0xff] 0.0
        $region36: #{_lambda_.1} parent=31 // pred_fallthru
          _
        %s208 = smul.u32 %s22, 128
        %s209 = sshra.s32 %s208, 3
        %s210 = sand.u32 %s208, 7
        %s211 = smul.addr %s209, 4
        %s212 = scalar_lea.vmem %s1, %s211
        %v213 = vld [vmem:[%s212] sm:$0xf]
        %v214 = vld [vmem:[%s212 + $0x4] sm:$0xf]
        %v215 = vld [vmem:[%s212 + $0x8] sm:$0xf]
        %v216 = vld [vmem:[%s212 + $0xc] sm:$0xf]
        %v217 = vld [vmem:[%s212 + $0x10] sm:$0xf]
        %v218 = vld [vmem:[%s212 + $0x14] sm:$0xf]
        %v219 = vld [vmem:[%s212 + $0x18] sm:$0xf]
        %v220 = vld [vmem:[%s212 + $0x1c] sm:$0xf]
        %v221 = vld [vmem:[%s212 + $0x20] sm:$0xf]
        %v222 = vld [vmem:[%s212 + $0x24] sm:$0xf]
        %v223 = vld [vmem:[%s212 + $0x28] sm:$0xf]
        %v224 = vld [vmem:[%s212 + $0x2c] sm:$0xf]
        %v225 = vld [vmem:[%s212 + $0x30] sm:$0xf]
        %v226 = vld [vmem:[%s212 + $0x34] sm:$0xf]
        %v227 = vld [vmem:[%s212 + $0x38] sm:$0xf]
        %v228 = vld [vmem:[%s212 + $0x3c] sm:$0xf]
        %v229 = vld [vmem:[#allocation2] sm:$0xff]
        %v230 = vld [vmem:[#allocation2 + $0x8] sm:$0xff]
        %v231 = vld [vmem:[#allocation2 + $0x10] sm:$0xff]
        %v232 = vld [vmem:[#allocation2 + $0x18] sm:$0xff]
        %v233 = vld [vmem:[#allocation2 + $0x20] sm:$0xff]
        %v234 = vld [vmem:[#allocation2 + $0x28] sm:$0xff]
        %v235 = vld [vmem:[#allocation2 + $0x30] sm:$0xff]
        %v236 = vld [vmem:[#allocation2 + $0x38] sm:$0xff]
        %v237 = vld [vmem:[%s192] sm:$0xf]
        %v238 = vld [vmem:[%s192 + $0x4] sm:$0xf]
        %v239 = vld [vmem:[%s192 + $0x8] sm:$0xf]
        %v240 = vld [vmem:[%s192 + $0xc] sm:$0xf]
        %v241 = vld [vmem:[%s192 + $0x10] sm:$0xf]
        %v242 = vld [vmem:[%s192 + $0x14] sm:$0xf]
        %v243 = vld [vmem:[%s192 + $0x18] sm:$0xf]
        %v244 = vld [vmem:[%s192 + $0x1c] sm:$0xf]
        %v253 = vunpack.c.l.b16 %v237
        %v254 = vunpack.c.l.b16 %v238
        %v255 = vunpack.c.l.b16 %v239
        %v256 = vunpack.c.l.b16 %v240
        %v257 = vunpack.c.l.b16 %v241
        %v258 = vunpack.c.l.b16 %v242
        %v259 = vunpack.c.l.b16 %v243
        %v260 = vunpack.c.l.b16 %v244
        %v261 = vpack.c.b16 %v254, %v253
        %v262 = vpack.c.b16 %v256, %v255
        %v263 = vpack.c.b16 %v258, %v257
        %v264 = vpack.c.b16 %v260, %v259
        %v285 = vunpack.c.l.b16 %v213
        %v286 = vunpack.c.l.b16 %v214
        %v287 = vunpack.c.l.b16 %v215
        %v288 = vunpack.c.l.b16 %v216
        %v289 = vunpack.c.l.b16 %v217
        %v290 = vunpack.c.l.b16 %v218
        %v291 = vunpack.c.l.b16 %v219
        %v292 = vunpack.c.l.b16 %v220
        %v293 = vunpack.c.l.b16 %v221
        %v294 = vunpack.c.l.b16 %v222
        %v295 = vunpack.c.l.b16 %v223
        %v296 = vunpack.c.l.b16 %v224
        %v297 = vunpack.c.l.b16 %v225
        %v298 = vunpack.c.l.b16 %v226
        %v299 = vunpack.c.l.b16 %v227
        %v300 = vunpack.c.l.b16 %v228
        %v301 = vpack.c.b16 %v286, %v285
        %v302 = vpack.c.b16 %v288, %v287
        %v303 = vpack.c.b16 %v290, %v289
        %v304 = vpack.c.b16 %v292, %v291
        %v305 = vpack.c.b16 %v294, %v293
        %v306 = vpack.c.b16 %v296, %v295
        %v307 = vpack.c.b16 %v298, %v297
        %v308 = vpack.c.b16 %v300, %v299
        %317 = vmatprep.subr.bf16.mxu0 0
        %318 = vmatpush1.bf16.msra.mxu0 %v301
        %319 = vmatprep.subr.bf16.mxu0 0
        %320 = vmatpush1.bf16.msra.mxu0 %v302
        %321 = vmatprep.subr.bf16.mxu0 0
        %322 = vmatpush1.bf16.msra.mxu0 %v303
        %323 = vmatprep.subr.bf16.mxu0 0
        %324 = vmatpush1.bf16.msra.mxu0 %v304
        %325 = vmatprep.subr.bf16.mxu0 0
        %326 = vmatpush1.bf16.msra.mxu0 %v305
        %327 = vmatprep.subr.bf16.mxu0 0
        %328 = vmatpush1.bf16.msra.mxu0 %v306
        %329 = vmatprep.subr.bf16.mxu0 0
        %330 = vmatpush1.bf16.msra.mxu0 %v307
        %331 = vmatprep.subr.bf16.mxu0 0
        %332 = vmatpush1.bf16.msra.mxu0 %v308
        %333 = vmatprep.subr.bf16.mxu0 0
        %334 = vmatpush1.bf16.msra.mxu0 0
        %335 = vmatprep.subr.bf16.mxu0 0
        %336 = vmatpush1.bf16.msra.mxu0 0
        %337 = vmatprep.subr.bf16.mxu0 0
        %338 = vmatpush1.bf16.msra.mxu0 0
        %339 = vmatprep.subr.bf16.mxu0 0
        %340 = vmatpush1.bf16.msra.mxu0 0
        %341 = vmatprep.subr.bf16.mxu0 0
        %342 = vmatpush1.bf16.msra.mxu0 0
        %343 = vmatprep.subr.bf16.mxu0 0
        %344 = vmatpush1.bf16.msra.mxu0 0
        %345 = vmatprep.subr.bf16.mxu0 0
        %346 = vmatpush1.bf16.msra.mxu0 0
        %347 = vmatprep.subr.bf16.mxu0 0
        %348 = vmatpush1.bf16.msra.mxu0 0
        %349 = vmatprep.mubr.bf16.mxu0 0
        %350 = vmatmul.mubr.bf16.gmra.mrb[0].mxu0 %v261
        %v351 = vpop.f32.mrb[0].mxu0
        %v352 = vadd.f32 0.0, %v351
        %v353 = vpop.f32.mrb[0].mxu0
        %v354 = vpop.f32.mrb[0].mxu0
        %v355 = vadd.f32 0.0, %v354
        %v356 = vpop.f32.mrb[0].mxu0
        %357 = vmatprep.mubr.bf16.mxu0 0
        %358 = vmatmul.mubr.bf16.gmra.mrb[0].mxu0 %v262
        %v359 = vpop.f32.mrb[0].mxu0
        %v360 = vadd.f32 0.0, %v359
        %v361 = vpop.f32.mrb[0].mxu0
        %v362 = vpop.f32.mrb[0].mxu0
        %v363 = vadd.f32 0.0, %v362
        %v364 = vpop.f32.mrb[0].mxu0
        %365 = vmatprep.mubr.bf16.mxu0 0
        %366 = vmatmul.mubr.bf16.gmra.mrb[0].mxu0 %v263
        %v367 = vpop.f32.mrb[0].mxu0
        %v368 = vadd.f32 0.0, %v367
        %v369 = vpop.f32.mrb[0].mxu0
        %v370 = vpop.f32.mrb[0].mxu0
        %v371 = vadd.f32 0.0, %v370
        %v372 = vpop.f32.mrb[0].mxu0
        %373 = vmatprep.mubr.bf16.mxu0 0
        %374 = vmatmul.mubr.bf16.gmra.mrb[0].mxu0 %v264
        %v375 = vpop.f32.mrb[0].mxu0
        %v376 = vadd.f32 0.0, %v375
        %v377 = vpop.f32.mrb[0].mxu0
        %v378 = vpop.f32.mrb[0].mxu0
        %v379 = vadd.f32 0.0, %v378
        %v380 = vpop.f32.mrb[0].mxu0
        %381 = vdwg.mxu0
        %v382 = vadd.f32 %v229, %v352
        %v383 = vadd.f32 %v230, %v355
        %v384 = vadd.f32 %v231, %v360
        %v385 = vadd.f32 %v232, %v363
        %v386 = vadd.f32 %v233, %v368
        %v387 = vadd.f32 %v234, %v371
        %v388 = vadd.f32 %v235, %v376
        %v389 = vadd.f32 %v236, %v379
        %390 = vst [vmem:[#allocation2] sm:$0xff] %v382
        %391 = vst [vmem:[#allocation2 + $0x8] sm:$0xff] %v383
        %392 = vst [vmem:[#allocation2 + $0x10] sm:$0xff] %v384
        %393 = vst [vmem:[#allocation2 + $0x18] sm:$0xff] %v385
        %394 = vst [vmem:[#allocation2 + $0x20] sm:$0xff] %v386
        %395 = vst [vmem:[#allocation2 + $0x28] sm:$0xff] %v387
        %396 = vst [vmem:[#allocation2 + $0x30] sm:$0xff] %v388
        %397 = vst [vmem:[#allocation2 + $0x38] sm:$0xff] %v389
        // Predicated region
        $region37: #{_lambda_.1} parent=31 // pred_check
          %p398 = pneg %p196
        $region38: #{_lambda_.1} parent=31 // pred_check_branch
          %400 = sbr.rel (%p398) target = $region40
        $region39: #{_lambda_.1} parent=31 // pred_region
          %v401 = vld [vmem:[#allocation2] sm:$0xff]
          %v402 = vld [vmem:[#allocation2 + $0x8] sm:$0xff]
          %v403 = vld [vmem:[#allocation2 + $0x10] sm:$0xff]
          %v404 = vld [vmem:[#allocation2 + $0x18] sm:$0xff]
          %v405 = vld [vmem:[#allocation2 + $0x20] sm:$0xff]
          %v406 = vld [vmem:[#allocation2 + $0x28] sm:$0xff]
          %v407 = vld [vmem:[#allocation2 + $0x30] sm:$0xff]
          %v408 = vld [vmem:[#allocation2 + $0x38] sm:$0xff]
          %v409 = vld [vmem:[%s2] sm:$0x1]
          %v411 = vlaneseq
          %v412 = vshrl.u32 %v411, 7
          %v413 = vsub.s32 0, %v412
          %v414 = vrot.slane %v409, %v413
          %v416 = vadd.f32 %v401, %v414
          %v417 = vadd.f32 %v402, %v414
          %v418 = vadd.f32 %v403, %v414
          %v419 = vadd.f32 %v404, %v414
          %v420 = vadd.f32 %v405, %v414
          %v421 = vadd.f32 %v406, %v414
          %v422 = vadd.f32 %v407, %v414
          %v423 = vadd.f32 %v408, %v414
          %424 = vst [vmem:[%s184] sm:$0xff] %v416
          %425 = vst [vmem:[%s184 + $0x8] sm:$0xff] %v417
          %426 = vst [vmem:[%s184 + $0x10] sm:$0xff] %v418
          %427 = vst [vmem:[%s184 + $0x18] sm:$0xff] %v419
          %428 = vst [vmem:[%s184 + $0x20] sm:$0xff] %v420
          %429 = vst [vmem:[%s184 + $0x28] sm:$0xff] %v421
          %430 = vst [vmem:[%s184 + $0x30] sm:$0xff] %v422
          %431 = vst [vmem:[%s184 + $0x38] sm:$0xff] %v423
        $region40: #{_lambda_.1} parent=31 // pred_fallthru
          _
        %s432 = sand.u32 %s107, 1
        %s433 = scalar_lea.sflag [#allocation4], %s432
        %s434 = sand.u32 %s107, 1
        %s435 = smul.addr %s434, 64
        %s436 = scalar_lea.vmem [#allocation3], %s435
        // Predicated region
        $region41: #{_lambda_.1} parent=31 // pred_check
          %p437 = pneg %p117
        $region42: #{_lambda_.1} parent=31 // pred_check_branch
          %439 = sbr.rel (%p437) target = $region44
        $region43: #{_lambda_.1} parent=31 // pred_region
          %s440 = smul.u32 8, %s21
          %s442 = ssub.s32 1024, 1024
          %443 = vsyncadd %s433, %s442
          %s444 = smul.addr %s440, 128
          %s445 = scalar_lea.hbm %s3, %s444
          %s446 = sshll.u32 %s436, 4
          %s447 = int_to_ptr.vmem [resolvable:$true] %s446
          %452 = dma.vmem_to_hbm [thread:$0]  %s447, 1024, %s445, %s433, 128, 128, 8
        $region44: #{_lambda_.1} parent=31 // pred_fallthru
          _
      $region32: #{_lambda_.1} parent=5 // pred_fallthru
        _
      %p453 = scmp.le.s32.totalorder 2, %s12
      // Predicated region
      $region45: #{_lambda_.1} parent=5 // pred_check
        %p454 = pneg %p453
      $region46: #{_lambda_.1} parent=5 // pred_check_branch
        %456 = sbr.rel (%p454) target = $region48
      $region47: #{_lambda_.1} parent=5 // pred_region
        %s457 = ssub.s32 %s12, 2
        // Predicated region
        $region49: #{_lambda_.1} parent=47 // pred_check
          %p458 = pneg %p123
        $region50: #{_lambda_.1} parent=47 // pred_check_branch
          %460 = sbr.rel (%p458) target = $region52
        $region51: #{_lambda_.1} parent=47 // pred_region
          %s461 = sand.u32 %s108, 1
          %s462 = scalar_lea.sflag [#allocation4], %s461
          %s463 = sand.u32 %s108, 1
          %s464 = smul.addr %s463, 64
          %s465 = scalar_lea.vmem [#allocation3], %s464
          %466 = dma.done %s462, 1024
        $region52: #{_lambda_.1} parent=47 // pred_fallthru
          _
      $region48: #{_lambda_.1} parent=5 // pred_fallthru
        _
    $region6: #{_lambda_.1} parent=1 // loop_footer
      %s16 = sadd.s32 1, %s12
    $region7: #{_lambda_.1} parent=1 // loop_footer_branch
      %11 = sbr.rel target = $region3
    $region8: #{_lambda_.1} parent=1 // loop_exit
      _
    %467 = vsyncpa [#allocation4], 1
    %s468 = scalar_lea.sflag [#allocation4], 1
    %469 = vsyncpa %s468, 1

</llo_original>
